<compile_context>
chip_gen: v6e
topology: v6e:2x2x1
jax: 0.10.0
libtpu: 0.0.40
codegen_flags: <defaults>
</compile_context>

<pallas_src>
import math
import functools

import jax
import jax.numpy as jnp
from jax.experimental import pallas as pl
from jax.experimental.pallas import tpu as pltpu


def _elu(x):
    # ELU (alpha=1.0), inf-safe: expm1 only sees the negative branch.
    return jnp.where(x > 0, x, jnp.expm1(jnp.where(x > 0, 0.0, x)))


def _round_up(n, m):
    return ((n + m - 1) // m) * m


def _pad2(a, shape):
    return jnp.pad(a, [(0, s - d) for d, s in zip(a.shape, shape)])


# -----------------------------------------------------------------------------
# Kernel
# -----------------------------------------------------------------------------
def cuinet_orth_kernel(x_ref, taps_ref, w1_ref, w2_ref, w3_ref, wo_ref, b_ref,
                       o_ref, *, roll_shifts):
    """One batch tile of the CuiNet_orth forward.

    x_ref    : (bm, Lp)  f32   raw input lanes (zero padded past L)
    taps_ref : (8, Lp)   f32   rows 0..4 = conv taps / std, row 5 = folded bias
    w1_ref   : (Lp, H)   bf16  (I - toto^T toto) @ W1, rows >= 614 exactly zero
    w2..wo   : (H, H)    bf16
    b_ref    : (8, H)    f32   rows 0..3 = fc1 / fc2 / fc3 / out biases
    o_ref    : (bm, H)   f32
    """
    x = x_ref[...]

    # --- normalization + Conv1d(1,1,k=5,'valid'), folded into 5 taps ---------
    # 4 lane-rolls land on the XLU and 5 broadcast FMAs on the VPU; both are
    # idle while the MXU runs the fc matmuls, so the FIR is essentially free.
    acc = taps_ref[0:1, :] * x
    for k, shift in zip(range(1, 5), roll_shifts):
        acc = acc + taps_ref[k:k + 1, :] * pltpu.roll(x, shift=shift, axis=1)
    h = _elu(acc + taps_ref[5:6, :])
    # Lanes >= 614 hold wrapped/padded garbage (finite, bounded); they are
    # annihilated by the exactly-zero rows >= 614 of w1_ref.

    # --- fc1 (orth projection pre-folded into the weight), fc2, fc3, out -----
    # bf16 operands -> native MXU rate; f32 accumulation; biases/ELU in f32.
    h = jnp.dot(h.astype(jnp.bfloat16), w1_ref[...],
                preferred_element_type=jnp.float32)
    h = _elu(h + b_ref[0:1, :])
    h = jnp.dot(h.astype(jnp.bfloat16), w2_ref[...],
                preferred_element_type=jnp.float32)
    h = _elu(h + b_ref[1:2, :])
    h = jnp.dot(h.astype(jnp.bfloat16), w3_ref[...],
                preferred_element_type=jnp.float32)
    h = _elu(h + b_ref[2:3, :])
    # TODO(synk): ManualDropout is stochastic only in training mode; identity here (eval).
    o_ref[...] = jnp.dot(h.astype(jnp.bfloat16), wo_ref[...],
                         preferred_element_type=jnp.float32) + b_ref[3:4, :]


# -----------------------------------------------------------------------------
# One-time roll-direction probe (guards against rotate-convention differences)
# -----------------------------------------------------------------------------
def _roll_probe_kernel(x_ref, o_ref):
    o_ref[...] = pltpu.roll(x_ref[...], shift=1, axis=1)


def detect_roll_matches_jnp():
    """True if pltpu.roll follows jnp.roll's convention (positive shift moves
    data toward higher lane indices).  One tiny probe call at setup time."""
    x = jnp.tile(jax.lax.iota(jnp.float32, 128)[None, :], (8, 1))
    rolled = pl.pallas_call(
        _roll_probe_kernel,
        out_shape=jax.ShapeDtypeStruct((8, 128), jnp.float32),
    )(x)
    return bool(rolled[0, 0] == 127.0)   # jnp.roll([0..127], 1)[0] == 127


# -----------------------------------------------------------------------------
# Parameters
# -----------------------------------------------------------------------------
def init_params(key, input_dims, out_dims=1, orthog_dims=4):
    """kaiming_normal_(mode='fan_out', relu)-style init, bias=0, toto ~ U(-1,1)."""
    conv1d_dims = input_dims - 4
    fc1, fc2, fc3 = 36, 18, 12
    ks = jax.random.split(key, 6)

    def kaiming_out(k, out_f, in_f):
        std = math.sqrt(2.0 / out_f)  # fan_out mode, relu gain
        return std * jax.random.normal(k, (out_f, in_f), dtype=jnp.float32)

    # Conv1d(1,1,5): fan_out = out_c * k = 5
    conv_w = math.sqrt(2.0 / 5.0) * jax.random.normal(ks[0], (1, 5), dtype=jnp.float32)
    conv_b = jnp.zeros((1, 1), jnp.float32)
    # toto ~ U(-1,1); the module hard-codes width 614 == conv1d_dims (input_dims=618)
    toto = jax.random.uniform(ks[1], (orthog_dims, conv1d_dims),
                              dtype=jnp.float32, minval=-1.0, maxval=1.0)
    # Linear weights stored pre-transposed as (in, out) for h @ W
    w1 = kaiming_out(ks[2], fc1, conv1d_dims).T
    w2 = kaiming_out(ks[3], fc2, fc1).T
    w3 = kaiming_out(ks[4], fc3, fc2).T
    wo = kaiming_out(ks[5], out_dims, fc3).T
    return dict(conv_w=conv_w, conv_b=conv_b, toto=toto,
                w1=w1, b1=jnp.zeros((1, fc1), jnp.float32),
                w2=w2, b2=jnp.zeros((1, fc2), jnp.float32),
                w3=w3, b3=jnp.zeros((1, fc3), jnp.float32),
                wo=wo, bo=jnp.zeros((1, out_dims), jnp.float32))


def prepare_params(params, mean, std):
    """One-time preprocessing (outside the jitted forward, per perf review):
    fold normalization into the conv taps, fold the rank-4 orth projection into
    fc1, pad every feature dim to 128 lanes and cast matmul weights to bf16."""
    conv1d_dims, _ = params["w1"].shape              # (614, 36)
    L = conv1d_dims + 4
    Lp = _round_up(L, 128)                           # 618 -> 640 (covers 614 too)
    H = 128

    # normalization folded into the conv: taps = w/std, bias = b - mean*sum(taps)
    taps = params["conv_w"].reshape(5) / std
    bias_val = params["conv_b"][0, 0] - mean * jnp.sum(taps)
    rows = jnp.concatenate([taps, jnp.reshape(bias_val, (1,))])          # (6,)
    taps_v = jnp.zeros((8, Lp), jnp.float32).at[:6, :].set(rows[:, None])

    # orth step x <- x - x @ (toto^T toto) folded into fc1 (rank-4 update)
    toto = params["toto"]                                                # (4, 614)
    w1_eff = params["w1"] - toto.T @ (toto @ params["w1"])               # (614, 36)

    w1p = _pad2(w1_eff, (Lp, H)).astype(jnp.bfloat16)    # rows >= 614 stay zero
    w2p = _pad2(params["w2"], (H, H)).astype(jnp.bfloat16)
    w3p = _pad2(params["w3"], (H, H)).astype(jnp.bfloat16)
    wop = _pad2(params["wo"], (H, H)).astype(jnp.bfloat16)

    biases = jnp.zeros((8, H), jnp.float32)
    for i, name in enumerate(("b1", "b2", "b3", "bo")):
        b = params[name].reshape(-1)
        biases = biases.at[i, :b.shape[0]].set(b)

    return dict(taps=taps_v, w1=w1p, w2=w2p, w3=w3p, wo=wop, biases=biases)


# -----------------------------------------------------------------------------
# Forward
# -----------------------------------------------------------------------------
@functools.partial(jax.jit,
                   static_argnames=("out_dims", "block_b", "roll_matches_jnp"))
def cuinet_orth_forward(x, prep, *, out_dims=1, block_b=512,
                        roll_matches_jnp=True):
    """x: (B, 1, L) float32 (NCL, like PyTorch). Returns (B, out_dims) f32."""
    B, C, L = x.shape
    assert C == 1
    Lp, H = prep["w1"].shape                         # (640, 128)

    # Batch tile: large tiles amortize the ~0.35us/step pipeline overhead and
    # run near the HBM roofline; clamp so small batches still produce >= 2
    # grid steps (v7x has two TensorCores; this axis is marked "parallel").
    bm = min(block_b, _round_up(max(-(-B // 2), 8), 8))
    Bp = _round_up(B, bm)

    # pad batch to the tile and input lanes to 128 (zeros past L)
    x2d = jnp.zeros((Bp, Lp), jnp.float32).at[:B, :L].set(x.reshape(B, L))

    # static shift amounts for conv taps k = 1..4 (direction from the probe)
    if roll_matches_jnp:
        roll_shifts = tuple(Lp - k for k in range(1, 5))   # == roll by -k
    else:
        roll_shifts = tuple(range(1, 5))
    kernel = functools.partial(cuinet_orth_kernel, roll_shifts=roll_shifts)

    const = lambda i: (0, 0)
    out = pl.pallas_call(
        kernel,
        out_shape=jax.ShapeDtypeStruct((Bp, H), jnp.float32),
        grid_spec=pltpu.PrefetchScalarGridSpec(
            num_scalar_prefetch=0,
            grid=(Bp // bm,),
            in_specs=[
                pl.BlockSpec((bm, Lp), lambda i: (i, 0)),   # x tile (pipelined)
                pl.BlockSpec((8, Lp), const),               # conv taps + bias
                pl.BlockSpec((Lp, H), const),               # fc1 (orth folded)
                pl.BlockSpec((H, H), const),                # fc2
                pl.BlockSpec((H, H), const),                # fc3
                pl.BlockSpec((H, H), const),                # out
                pl.BlockSpec((8, H), const),                # fc biases (merged)
            ],
            out_specs=pl.BlockSpec((bm, H), lambda i: (i, 0)),  # lane-dense out
        ),
        # ~3.6 MiB of VMEM at bm=512 -> well under every chip's scoped default;
        # set vmem_limit_bytes explicitly only if block_b is pushed past ~2048.
        compiler_params=pltpu.CompilerParams(
            dimension_semantics=("parallel",)),
    )(x2d, prep["taps"], prep["w1"], prep["w2"], prep["w3"], prep["wo"],
      prep["biases"])
    return out[:B, :out_dims]


# -----------------------------------------------------------------------------
# Pure-JAX reference (original op order, f32)
# -----------------------------------------------------------------------------
def reference_forward(x, params, mean, std):
    B, _, L = x.shape
    xn = (x.reshape(B, L) - mean) / std
    Lout = L - 4
    acc = jnp.full((B, Lout), params["conv_b"][0, 0])
    for k in range(5):
        acc = acc + params["conv_w"][0, k] * xn[:, k:k + Lout]
    h = _elu(acc)
    proj = params["toto"].T @ params["toto"]     # (614, 614)
    h = h - h @ proj
    h = _elu(h @ params["w1"] + params["b1"])
    h = _elu(h @ params["w2"] + params["b2"])
    h = _elu(h @ params["w3"] + params["b3"])
    return h @ params["wo"] + params["bo"]


if __name__ == "__main__":
    key = jax.random.PRNGKey(0)
    k_x, k_p = jax.random.split(key)

    # input_dims must be 618 so the conv output width matches the module's
    # hard-coded 614-wide `toto` projection; batch chosen small and not a
    # multiple of the batch tile to exercise the padding path.
    B, input_dims, out_dims, orthog_dims = 200, 618, 1, 4
    mean, std = 0.5, 2.0

    x = jax.random.normal(k_x, (B, 1, input_dims), dtype=jnp.float32)
    params = init_params(k_p, input_dims, out_dims, orthog_dims)

    prep = prepare_params(params, mean, std)     # one-time fold / pad / bf16 cast
    roll_jnp = detect_roll_matches_jnp()         # one-time rotate-direction probe

    y = cuinet_orth_forward(x, prep, out_dims=out_dims, roll_matches_jnp=roll_jnp)
    y = jax.block_until_ready(y)

    y_ref = reference_forward(x, params, mean, std)
    assert y.shape == (B, out_dims)
    # bf16 MXU operands (with f32 accumulation) vs. the pure-f32 reference:
    # tolerance widened vs the old all-f32 kernel's 1e-3.
    rel_err = float(jnp.max(jnp.abs(y - y_ref)) / (jnp.max(jnp.abs(y_ref)) + 1e-6))
    assert rel_err < 2e-2, f"mismatch vs JAX reference: rel err {rel_err}"

    print("KERNEL_OK")
</pallas_src>

<mosaic_0001>
module attributes {stable_mosaic.version = 11 : i64} {
  func.func @_roll_probe_kernel(%arg0: memref<8x128xf32, #tpu.memory_space<vmem>>, %arg1: memref<8x128xf32, #tpu.memory_space<vmem>>) attributes {dimension_semantics = [], scalar_prefetch = 0 : i64, scratch_operands = 0 : i64, tpu.core_type = #tpu.core_type<tc>} {
    %c0 = arith.constant 0 : index
    %c0_0 = arith.constant 0 : index
    %0 = vector.load %arg0[%c0, %c0_0] : memref<8x128xf32, #tpu.memory_space<vmem>>, vector<8x128xf32>
    %c1_i32 = arith.constant 1 : i32
    %1 = tpu.dynamic_rotate %0 by %c1_i32 dim 1 : vector<8x128xf32>, i32 -> vector<8x128xf32>
    %c0_1 = arith.constant 0 : index
    %c0_2 = arith.constant 0 : index
    %2 = vector.load %arg1[%c0_1, %c0_2] : memref<8x128xf32, #tpu.memory_space<vmem>>, vector<8x128xf32>
    tpu.vector_store %arg1[%c0_1, %c0_2], %1 {strides = array<i32>} : memref<8x128xf32, #tpu.memory_space<vmem>>, vector<8x128xf32>,
    return
  }
}

</mosaic_0001>

<llo_original>
// kernel: tpu_custom_call.1
$region0: #{tpu_custom_call.1}
  #allocation0 [shape = 'u32[]', space=smem, size = 0x4, offset = 0x4, fixed_abs, tag = 'smem constant byte address 0x4 - core index']
  #allocation1 [shape = 'u32[144,128]{1,0:T(1,128)}', space=vmem, size = 0x12000, scoped, tag = 'internal scratch']
  %s0 = inlined_call_operand.hbm [shape: f32[8,128], index: 0, kind: input, shape index: {}]
  %s1 = inlined_call_operand.hbm [shape: f32[8,128], index: 1, kind: output, shape index: {}]
  %s2 = sld [smem:[#allocation0]]
  $region18: #{tpu_custom_call.1} parent=0
    _
  %s4 = ssub.s32 1, %s2
  %s5 = scalar_select 0, %s4, %s2
  $region1: #{tpu_custom_call.1} parent=0
    #allocation2 [shape = 'u8[4096]{0}', space=vmem, size = 0x1000, scoped, tag = 'input window, operand 0, single buffered']
    #allocation3 [shape = 's32[1]{0}', space=sflag, size = 0x4, scoped, tag = 'scoped memory for tpu_custom_call.1']
    #allocation4 [shape = 's32[1]{0}', space=sflag, size = 0x4, scoped, tag = 'scoped memory for tpu_custom_call.1']
    #allocation5 [shape = 'u8[4096]{0}', space=vmem, size = 0x1000, scoped, tag = 'output window, operand 0, single buffered']
    %6 = vsyncpa [#allocation3], 0
    %7 = vsyncpa [#allocation4], 0
    // Predicated region
    $region2: #{tpu_custom_call.1} parent=1 // pred_check
      _
    $region3: #{tpu_custom_call.1} parent=1 // pred_check_branch
      %9 = sbr.rel (0) target = $region5
    $region4: #{tpu_custom_call.1} parent=1 // pred_region
      %s11 = ssub.s32 128, 128
      %12 = vsyncadd [#allocation3], %s11
      %s14 = sshll.u32 [#allocation2], 4
      %s15 = int_to_ptr.vmem [resolvable:$true] %s14
      %17 = dma.hbm_to_vmem [thread:$0]  %s0, 128, %s15, [#allocation3]
    $region5: #{tpu_custom_call.1} parent=1 // pred_fallthru
      _
    // Predicated region
    $region6: #{tpu_custom_call.1} parent=1 // pred_check
      _
    $region7: #{tpu_custom_call.1} parent=1 // pred_check_branch
      %19 = sbr.rel (0) target = $region9
    $region8: #{tpu_custom_call.1} parent=1 // pred_region
      %20 = dma.done [#allocation3], 128
    $region9: #{tpu_custom_call.1} parent=1 // pred_fallthru
      _
    %v21 = vld [vmem:[#allocation2] sm:$0xff]
    %22 = vrot.lane.b32.xlu0 %v21, 1
    %v23 = vpop.permute.xlu0 %22
    %24 = vst [vmem:[#allocation5] sm:$0xff] %v23
    // Predicated region
    $region10: #{tpu_custom_call.1} parent=1 // pred_check
      _
    $region11: #{tpu_custom_call.1} parent=1 // pred_check_branch
      %26 = sbr.rel (0) target = $region13
    $region12: #{tpu_custom_call.1} parent=1 // pred_region
      %s28 = ssub.s32 128, 128
      %29 = vsyncadd [#allocation4], %s28
      %s31 = sshll.u32 [#allocation5], 4
      %s32 = int_to_ptr.vmem [resolvable:$true] %s31
      %34 = dma.vmem_to_hbm [thread:$0]  %s32, 128, %s1, [#allocation4]
    $region13: #{tpu_custom_call.1} parent=1 // pred_fallthru
      _
    // Predicated region
    $region14: #{tpu_custom_call.1} parent=1 // pred_check
      _
    $region15: #{tpu_custom_call.1} parent=1 // pred_check_branch
      %36 = sbr.rel (0) target = $region17
    $region16: #{tpu_custom_call.1} parent=1 // pred_region
      %37 = dma.done [#allocation4], 128
    $region17: #{tpu_custom_call.1} parent=1 // pred_fallthru
      _
    %38 = vsyncpa [#allocation3], 1
    %39 = vsyncpa [#allocation4], 1

</llo_original>
